<compile_context>
chip_gen: v7x
topology: tpu7x:2x2x1
jax: 0.10.0
libtpu: 0.0.40
codegen_flags: <defaults>
</compile_context>

<pallas_src>
import jax
import jax.numpy as jnp
from jax.experimental import pallas as pl
from jax.experimental.pallas import tpu as pltpu

SIGMOID_SCALAR = 1.83804 / 400.0
IN_DIM = 768
HID_DIM = 256
MAX_TILE = 1024  # rows per grid step


def _round_up(x, m):
    return (x + m - 1) // m * m


def nn_kernel(x1_ref, x2_ref, w1_ref, b1_ref, w2_ref, b2_ref, o_ref):
    w1 = w1_ref[...]          # (768, 256) bf16, VMEM-resident
    b1 = b1_ref[...]          # (1, 256) fp32

    # fc1 on both inputs, sharing the weight tile.  bf16 MXU operands, fp32 acc,
    # fp32 bias + ReLU on the VPU.  (.astype is a no-op if inputs are already bf16.)
    h1 = jnp.maximum(
        jnp.dot(x1_ref[...].astype(jnp.bfloat16), w1,
                preferred_element_type=jnp.float32) + b1, 0.0)
    h2 = jnp.maximum(
        jnp.dot(x2_ref[...].astype(jnp.bfloat16), w1,
                preferred_element_type=jnp.float32) + b1, 0.0)

    # fc2 (512 -> 1): cat((h1, h2), 1) @ W2 == h1 @ W2[:256] + h2 @ W2[256:].
    # Done as VPU multiply + lane reduction; an N=1 matmul would waste the MXU.
    z = jnp.sum(h1 * w2_ref[0:1, :] + h2 * w2_ref[1:2, :], axis=-1,
                keepdims=True) + b2_ref[0]

    # custom sigmoid: 1 / (1 + exp(-x * scalar)); reciprocal routed to the EUP.
    o_ref[...] = pl.reciprocal(1.0 + jnp.exp(-z * SIGMOID_SCALAR), approx=True)


def nn_forward(x1, x2, w1, b1, w2, b2):
    B = x1.shape[0]

    # Batch tile: multiple of 8 (sublane), capped for VMEM headroom, and sized so
    # the grid has >= 2 steps whenever B allows (feeds both v7x TensorCores).
    half = _round_up(pl.cdiv(B, 2), 8)
    b_tile = max(8, min(MAX_TILE, half))
    grid = (pl.cdiv(B, b_tile),)

    # Parameter prep: bf16 fc1 weights (halves weight HBM traffic, native MXU path),
    # fp32 everywhere else; fc2 weights as lane-dense rows; b2 as an SMEM scalar.
    w1_bf = w1.astype(jnp.bfloat16)                        # (768, 256)
    b1_2d = b1.reshape(1, HID_DIM).astype(jnp.float32)     # (1, 256)
    w2_rows = w2.reshape(2, HID_DIM).astype(jnp.float32)   # (2, 256): [W2[:256]; W2[256:]]
    b2_1d = b2.reshape(1).astype(jnp.float32)              # (1,) scalar in SMEM

    out = pl.pallas_call(
        nn_kernel,
        out_shape=jax.ShapeDtypeStruct((B, 1), jnp.float32),
        grid=grid,
        in_specs=[
            pl.BlockSpec((b_tile, IN_DIM), lambda i: (i, 0)),       # x1 tile
            pl.BlockSpec((b_tile, IN_DIM), lambda i: (i, 0)),       # x2 tile
            pl.BlockSpec((IN_DIM, HID_DIM), lambda i: (0, 0)),      # w1 (resident)
            pl.BlockSpec((1, HID_DIM), lambda i: (0, 0)),           # b1 (resident)
            pl.BlockSpec((2, HID_DIM), lambda i: (0, 0)),           # w2 rows (resident)
            pl.BlockSpec(memory_space=pltpu.MemorySpace.SMEM),      # b2 scalar
        ],
        out_specs=pl.BlockSpec((b_tile, 1), lambda i: (i, 0)),
        compiler_params=pltpu.CompilerParams(
            dimension_semantics=("parallel",),
            vmem_limit_bytes=40 * 1024 * 1024,
        ),
    )(x1, x2, w1_bf, b1_2d, w2_rows, b2_1d)
    # Output is (B, 1): trailing partial-block writes past B are discarded by Pallas.
    # TODO(synk): lane-dense (1, b_tile) output (batch on lanes) only if a bundle
    # dump shows the epilogue dominated by vst.msk; output bytes are negligible here.
    return out


def kaiming_uniform(key, fan_in, shape):
    # He/kaiming uniform with gain=sqrt(2) (nonlinearity='relu'):
    # bound = sqrt(2) * sqrt(3 / fan_in)
    bound = jnp.sqrt(2.0) * jnp.sqrt(3.0 / fan_in)
    return jax.random.uniform(key, shape, jnp.float32, -bound, bound)


if __name__ == "__main__":
    key = jax.random.PRNGKey(0)
    k_w1, k_w2, k_x1, k_x2 = jax.random.split(key, 4)

    B = 8  # small batch

    # Parameters (fc1: 768->256, fc2: 512->1), biases zero-initialized.
    # Weights stored as (in, out) = transpose of the torch nn.Linear weight.
    w1 = kaiming_uniform(k_w1, IN_DIM, (IN_DIM, HID_DIM))
    b1 = jnp.zeros((HID_DIM,), jnp.float32)
    w2 = kaiming_uniform(k_w2, 2 * HID_DIM, (2 * HID_DIM, 1))
    b2 = jnp.zeros((1,), jnp.float32)

    x1 = jax.random.normal(k_x1, (B, IN_DIM), jnp.float32)
    x2 = jax.random.normal(k_x2, (B, IN_DIM), jnp.float32)

    fwd = jax.jit(nn_forward)
    out = jax.block_until_ready(fwd(x1, x2, w1, b1, w2, b2))

    # Reference in plain JAX (same bf16 MXU operands, fp32 accumulation).
    w1_bf = w1.astype(jnp.bfloat16)
    h1 = jnp.maximum(jnp.dot(x1.astype(jnp.bfloat16), w1_bf,
                             preferred_element_type=jnp.float32) + b1[None, :], 0.0)
    h2 = jnp.maximum(jnp.dot(x2.astype(jnp.bfloat16), w1_bf,
                             preferred_element_type=jnp.float32) + b1[None, :], 0.0)
    z = jnp.concatenate([h1, h2], axis=1) @ w2 + b2[None, :]
    ref = 1.0 / (1.0 + jnp.exp(-z * SIGMOID_SCALAR))

    assert out.shape == (B, 1)
    assert jnp.allclose(out, ref, atol=2e-3, rtol=0), (
        float(jnp.max(jnp.abs(out - ref))))

    print("KERNEL_OK")
</pallas_src>

<mosaic_0001>
module attributes {stable_mosaic.version = 11 : i64} {
  func.func @nn_kernel(%arg0: i32, %arg1: memref<8x768xf32, #tpu.memory_space<vmem>>, %arg2: memref<8x768xf32, #tpu.memory_space<vmem>>, %arg3: memref<768x256xbf16, #tpu.memory_space<vmem>>, %arg4: memref<1x256xf32, #tpu.memory_space<vmem>>, %arg5: memref<2x256xf32, #tpu.memory_space<vmem>>, %arg6: memref<1xf32, #tpu.memory_space<smem>>, %arg7: memref<8x1xf32, #tpu.memory_space<vmem>>) attributes {dimension_semantics = [#tpu.dimension_semantics<parallel>], iteration_bounds = array<i64: 1>, scalar_prefetch = 0 : i64, scratch_operands = 0 : i64, tpu.core_type = #tpu.core_type<tc>, window_params = [{transform_indices = @transform_0, window_bounds = array<i64: 8, 768>}, {transform_indices = @transform_1, window_bounds = array<i64: 8, 768>}, {pipeline_mode = #tpu.pipeline_mode<synchronous>, transform_indices = @transform_2, window_bounds = array<i64: 768, 256>}, {pipeline_mode = #tpu.pipeline_mode<synchronous>, transform_indices = @transform_3, window_bounds = array<i64: 1, 256>}, {pipeline_mode = #tpu.pipeline_mode<synchronous>, transform_indices = @transform_4, window_bounds = array<i64: 2, 256>}, {transform_indices = @transform_5, window_bounds = array<i64: 1>}, {transform_indices = @transform_6, window_bounds = array<i64: 8, 1>}]} {
    %c0 = arith.constant 0 : index
    %c0_0 = arith.constant 0 : index
    %0 = vector.load %arg3[%c0, %c0_0] : memref<768x256xbf16, #tpu.memory_space<vmem>>, vector<768x256xbf16>
    %c0_1 = arith.constant 0 : index
    %c0_2 = arith.constant 0 : index
    %1 = vector.load %arg4[%c0_1, %c0_2] : memref<1x256xf32, #tpu.memory_space<vmem>>, vector<1x256xf32>
    %c0_3 = arith.constant 0 : index
    %c0_4 = arith.constant 0 : index
    %2 = vector.load %arg1[%c0_3, %c0_4] : memref<8x768xf32, #tpu.memory_space<vmem>>, vector<8x768xf32>
    %3 = arith.truncf %2 : vector<8x768xf32> to vector<8x768xbf16>
    %cst = arith.constant dense<0.000000e+00> : vector<8x256xf32>
    %4 = tpu.matmul %3, %0, %cst {dimension_numbers = #tpu.dot_dimension_numbers<[1], [0], [0], [1], [0, 0, 1, 1], [], []>} : vector<8x768xbf16>, vector<768x256xbf16>, vector<8x256xf32> -> vector<8x256xf32>
    %5 = vector.broadcast %1 : vector<1x256xf32> to vector<8x256xf32>
    %6 = arith.addf %4, %5 : vector<8x256xf32>
    %cst_5 = arith.constant 0.000000e+00 : f32
    %7 = vector.broadcast %cst_5 : f32 to vector<8x256xf32>
    %8 = arith.maximumf %6, %7 : vector<8x256xf32>
    %c0_6 = arith.constant 0 : index
    %c0_7 = arith.constant 0 : index
    %9 = vector.load %arg2[%c0_6, %c0_7] : memref<8x768xf32, #tpu.memory_space<vmem>>, vector<8x768xf32>
    %10 = arith.truncf %9 : vector<8x768xf32> to vector<8x768xbf16>
    %cst_8 = arith.constant dense<0.000000e+00> : vector<8x256xf32>
    %11 = tpu.matmul %10, %0, %cst_8 {dimension_numbers = #tpu.dot_dimension_numbers<[1], [0], [0], [1], [0, 0, 1, 1], [], []>} : vector<8x768xbf16>, vector<768x256xbf16>, vector<8x256xf32> -> vector<8x256xf32>
    %12 = vector.broadcast %1 : vector<1x256xf32> to vector<8x256xf32>
    %13 = arith.addf %11, %12 : vector<8x256xf32>
    %cst_9 = arith.constant 0.000000e+00 : f32
    %14 = vector.broadcast %cst_9 : f32 to vector<8x256xf32>
    %15 = arith.maximumf %13, %14 : vector<8x256xf32>
    %c0_10 = arith.constant 0 : index
    %c0_11 = arith.constant 0 : index
    %16 = vector.load %arg5[%c0_10, %c0_11] : memref<2x256xf32, #tpu.memory_space<vmem>>, vector<1x256xf32>
    %17 = vector.broadcast %16 : vector<1x256xf32> to vector<8x256xf32>
    %18 = arith.mulf %8, %17 : vector<8x256xf32>
    %c1 = arith.constant 1 : index
    %c0_12 = arith.constant 0 : index
    %19 = vector.load %arg5[%c1, %c0_12] : memref<2x256xf32, #tpu.memory_space<vmem>>, vector<1x256xf32>
    %20 = vector.broadcast %19 : vector<1x256xf32> to vector<8x256xf32>
    %21 = arith.mulf %15, %20 : vector<8x256xf32>
    %22 = arith.addf %18, %21 : vector<8x256xf32>
    %cst_13 = arith.constant dense<0.000000e+00> : vector<8xf32>
    %23 = vector.multi_reduction <add>, %22, %cst_13 [1] : vector<8x256xf32> to vector<8xf32>
    %24 = vector.shape_cast %23 : vector<8xf32> to vector<8x1xf32>
    %c0_14 = arith.constant 0 : index
    %25 = memref.load %arg6[%c0_14] : memref<1xf32, #tpu.memory_space<smem>>
    %26 = vector.broadcast %25 : f32 to vector<8x1xf32>
    %27 = arith.addf %24, %26 : vector<8x1xf32>
    %cst_15 = arith.constant 0.000000e+00 : f32
    %28 = vector.broadcast %cst_15 : f32 to vector<8x1xf32>
    %29 = arith.subf %28, %27 : vector<8x1xf32>
    %cst_16 = arith.constant 4.595100e-03 : f32
    %30 = vector.broadcast %cst_16 : f32 to vector<8x1xf32>
    %31 = arith.mulf %29, %30 : vector<8x1xf32>
    %32 = math.exp %31 : vector<8x1xf32>
    %cst_17 = arith.constant 1.000000e+00 : f32
    %33 = vector.broadcast %cst_17 : f32 to vector<8x1xf32>
    %34 = arith.addf %33, %32 : vector<8x1xf32>
    %35 = tpu.reciprocal %34 {approx = true} : vector<8x1xf32> -> vector<8x1xf32>
    %c0_18 = arith.constant 0 : index
    %c0_19 = arith.constant 0 : index
    %36 = vector.load %arg7[%c0_18, %c0_19] : memref<8x1xf32, #tpu.memory_space<vmem>>, vector<8x1xf32>
    tpu.vector_store %arg7[%c0_18, %c0_19], %35 {strides = array<i32>} : memref<8x1xf32, #tpu.memory_space<vmem>>, vector<8x1xf32>,
    return
  }
  func.func @transform_0(%arg0: i32) -> (i32, i32) {
    %c0_i32 = arith.constant 0 : i32
    %c0_i32_0 = arith.constant 0 : i32
    return %arg0, %c0_i32 : i32, i32
  }
  func.func @transform_1(%arg0: i32) -> (i32, i32) {
    %c0_i32 = arith.constant 0 : i32
    %c0_i32_0 = arith.constant 0 : i32
    return %arg0, %c0_i32 : i32, i32
  }
  func.func @transform_2(%arg0: i32) -> (i32, i32) {
    %c0_i32 = arith.constant 0 : i32
    %c0_i32_0 = arith.constant 0 : i32
    %c0_i32_1 = arith.constant 0 : i32
    return %c0_i32, %c0_i32_0 : i32, i32
  }
  func.func @transform_3(%arg0: i32) -> (i32, i32) {
    %c0_i32 = arith.constant 0 : i32
    %c0_i32_0 = arith.constant 0 : i32
    %c0_i32_1 = arith.constant 0 : i32
    return %c0_i32, %c0_i32_0 : i32, i32
  }
  func.func @transform_4(%arg0: i32) -> (i32, i32) {
    %c0_i32 = arith.constant 0 : i32
    %c0_i32_0 = arith.constant 0 : i32
    %c0_i32_1 = arith.constant 0 : i32
    return %c0_i32, %c0_i32_0 : i32, i32
  }
  func.func @transform_5(%arg0: i32) -> i32 {
    %c0_i32 = arith.constant 0 : i32
    %c0_i32_0 = arith.constant 0 : i32
    return %c0_i32 : i32
  }
  func.func @transform_6(%arg0: i32) -> (i32, i32) {
    %c0_i32 = arith.constant 0 : i32
    %c0_i32_0 = arith.constant 0 : i32
    return %arg0, %c0_i32 : i32, i32
  }
}

</mosaic_0001>

<llo_original>
// kernel: nn_forward.1
$region0: #{nn_forward.1}
  #allocation0 [shape = 'u32[]', space=smem, size = 0x4, offset = 0x4, fixed_abs, tag = 'smem constant byte address 0x4 - core index']
  #allocation1 [shape = 'u32[144,128]{1,0:T(1,128)}', space=vmem, size = 0x12000, scoped, tag = 'internal scratch']
  #allocation2 [shape = 'f32[1]{0:T(128)S(6)}', space=smem, size = 0x200, scoped, tag = 'scoped memory for nn_forward.1']
  %s0 = inlined_call_operand.vmem [shape: f32[8,768], index: 0, kind: input, shape index: {}]
  %s1 = inlined_call_operand.vmem [shape: f32[8,768], index: 1, kind: input, shape index: {}]
  %s2 = inlined_call_operand.vmem [shape: bf16[768,256], index: 2, kind: input, shape index: {}]
  %s3 = inlined_call_operand.vmem [shape: f32[1,256], index: 3, kind: input, shape index: {}]
  %s4 = inlined_call_operand.vmem [shape: f32[2,256], index: 4, kind: input, shape index: {}]
  %s5 = inlined_call_operand.<no memory space> [shape: f32[1], index: 5, kind: input, shape index: {}]
  %s6 = inlined_call_operand.vmem [shape: f32[8,1], index: 6, kind: output, shape index: {}]
  %s7 = sld [smem:[#allocation0]]
  $region34: #{nn_forward.1} parent=0
    _
  %s9 = ssub.s32 1, %s7
  %s10 = scalar_select 0, %s9, %s7
  %11 = sst [smem:[#allocation2]] %s5
  // Predicated region
  $region2: #{nn_forward.1} parent=0 // pred_check
    _
  $region3: #{nn_forward.1} parent=0 // pred_check_branch
    %13 = sbr.rel (0) target = $region5
  $region4: #{nn_forward.1} parent=0 // pred_region
    _
  $region5: #{nn_forward.1} parent=0 // pred_fallthru
    _
  // Predicated region
  $region6: #{nn_forward.1} parent=0 // pred_check
    _
  $region7: #{nn_forward.1} parent=0 // pred_check_branch
    %15 = sbr.rel (0) target = $region9
  $region8: #{nn_forward.1} parent=0 // pred_region
    _
  $region9: #{nn_forward.1} parent=0 // pred_fallthru
    _
  // Predicated region
  $region10: #{nn_forward.1} parent=0 // pred_check
    _
  $region11: #{nn_forward.1} parent=0 // pred_check_branch
    %17 = sbr.rel (0) target = $region13
  $region12: #{nn_forward.1} parent=0 // pred_region
    _
  $region13: #{nn_forward.1} parent=0 // pred_fallthru
    _
  // Predicated region
  $region14: #{nn_forward.1} parent=0 // pred_check
    _
  $region15: #{nn_forward.1} parent=0 // pred_check_branch
    %19 = sbr.rel (0) target = $region17
  $region16: #{nn_forward.1} parent=0 // pred_region
    _
  $region17: #{nn_forward.1} parent=0 // pred_fallthru
    _
  // Predicated region
  $region18: #{nn_forward.1} parent=0 // pred_check
    _
  $region19: #{nn_forward.1} parent=0 // pred_check_branch
    %21 = sbr.rel (0) target = $region21
  $region20: #{nn_forward.1} parent=0 // pred_region
    _
  $region21: #{nn_forward.1} parent=0 // pred_fallthru
    _
  // Predicated region
  $region22: #{nn_forward.1} parent=0 // pred_check
    _
  $region23: #{nn_forward.1} parent=0 // pred_check_branch
    %23 = sbr.rel (0) target = $region25
  $region24: #{nn_forward.1} parent=0 // pred_region
    _
  $region25: #{nn_forward.1} parent=0 // pred_fallthru
    _
  %v24 = vld [vmem:[%s2] sm:$0xff]
  %v25 = vld [vmem:[%s2 + $0x8] sm:$0xff]
  %v26 = vld [vmem:[%s2 + $0x10] sm:$0xff]
  %v27 = vld [vmem:[%s2 + $0x18] sm:$0xff]
  %v28 = vld [vmem:[%s2 + $0x20] sm:$0xff]
  %v29 = vld [vmem:[%s2 + $0x28] sm:$0xff]
  %v30 = vld [vmem:[%s2 + $0x30] sm:$0xff]
  %v31 = vld [vmem:[%s2 + $0x38] sm:$0xff]
  %v32 = vld [vmem:[%s2 + $0x40] sm:$0xff]
  %v33 = vld [vmem:[%s2 + $0x48] sm:$0xff]
  %v34 = vld [vmem:[%s2 + $0x50] sm:$0xff]
  %v35 = vld [vmem:[%s2 + $0x58] sm:$0xff]
  %v36 = vld [vmem:[%s2 + $0x60] sm:$0xff]
  %v37 = vld [vmem:[%s2 + $0x68] sm:$0xff]
  %v38 = vld [vmem:[%s2 + $0x70] sm:$0xff]
  %v39 = vld [vmem:[%s2 + $0x78] sm:$0xff]
  %v40 = vld [vmem:[%s2 + $0x80] sm:$0xff]
  %v41 = vld [vmem:[%s2 + $0x88] sm:$0xff]
  %v42 = vld [vmem:[%s2 + $0x90] sm:$0xff]
  %v43 = vld [vmem:[%s2 + $0x98] sm:$0xff]
  %v44 = vld [vmem:[%s2 + $0xa0] sm:$0xff]
  %v45 = vld [vmem:[%s2 + $0xa8] sm:$0xff]
  %v46 = vld [vmem:[%s2 + $0xb0] sm:$0xff]
  %v47 = vld [vmem:[%s2 + $0xb8] sm:$0xff]
  %v48 = vld [vmem:[%s2 + $0xc0] sm:$0xff]
  %v49 = vld [vmem:[%s2 + $0xc8] sm:$0xff]
  %v50 = vld [vmem:[%s2 + $0xd0] sm:$0xff]
  %v51 = vld [vmem:[%s2 + $0xd8] sm:$0xff]
  %v52 = vld [vmem:[%s2 + $0xe0] sm:$0xff]
  %v53 = vld [vmem:[%s2 + $0xe8] sm:$0xff]
  %v54 = vld [vmem:[%s2 + $0xf0] sm:$0xff]
  %v55 = vld [vmem:[%s2 + $0xf8] sm:$0xff]
  %v56 = vld [vmem:[%s2 + $0x100] sm:$0xff]
  %v57 = vld [vmem:[%s2 + $0x108] sm:$0xff]
  %v58 = vld [vmem:[%s2 + $0x110] sm:$0xff]
  %v59 = vld [vmem:[%s2 + $0x118] sm:$0xff]
  %v60 = vld [vmem:[%s2 + $0x120] sm:$0xff]
  %v61 = vld [vmem:[%s2 + $0x128] sm:$0xff]
  %v62 = vld [vmem:[%s2 + $0x130] sm:$0xff]
  %v63 = vld [vmem:[%s2 + $0x138] sm:$0xff]
  %v64 = vld [vmem:[%s2 + $0x140] sm:$0xff]
  %v65 = vld [vmem:[%s2 + $0x148] sm:$0xff]
  %v66 = vld [vmem:[%s2 + $0x150] sm:$0xff]
  %v67 = vld [vmem:[%s2 + $0x158] sm:$0xff]
  %v68 = vld [vmem:[%s2 + $0x160] sm:$0xff]
  %v69 = vld [vmem:[%s2 + $0x168] sm:$0xff]
  %v70 = vld [vmem:[%s2 + $0x170] sm:$0xff]
  %v71 = vld [vmem:[%s2 + $0x178] sm:$0xff]
  %v72 = vld [vmem:[%s2 + $0x180] sm:$0xff]
  %v73 = vld [vmem:[%s2 + $0x188] sm:$0xff]
  %v74 = vld [vmem:[%s2 + $0x190] sm:$0xff]
  %v75 = vld [vmem:[%s2 + $0x198] sm:$0xff]
  %v76 = vld [vmem:[%s2 + $0x1a0] sm:$0xff]
  %v77 = vld [vmem:[%s2 + $0x1a8] sm:$0xff]
  %v78 = vld [vmem:[%s2 + $0x1b0] sm:$0xff]
  %v79 = vld [vmem:[%s2 + $0x1b8] sm:$0xff]
  %v80 = vld [vmem:[%s2 + $0x1c0] sm:$0xff]
  %v81 = vld [vmem:[%s2 + $0x1c8] sm:$0xff]
  %v82 = vld [vmem:[%s2 + $0x1d0] sm:$0xff]
  %v83 = vld [vmem:[%s2 + $0x1d8] sm:$0xff]
  %v84 = vld [vmem:[%s2 + $0x1e0] sm:$0xff]
  %v85 = vld [vmem:[%s2 + $0x1e8] sm:$0xff]
  %v86 = vld [vmem:[%s2 + $0x1f0] sm:$0xff]
  %v87 = vld [vmem:[%s2 + $0x1f8] sm:$0xff]
  %v88 = vld [vmem:[%s2 + $0x200] sm:$0xff]
  %v89 = vld [vmem:[%s2 + $0x208] sm:$0xff]
  %v90 = vld [vmem:[%s2 + $0x210] sm:$0xff]
  %v91 = vld [vmem:[%s2 + $0x218] sm:$0xff]
  %v92 = vld [vmem:[%s2 + $0x220] sm:$0xff]
  %v93 = vld [vmem:[%s2 + $0x228] sm:$0xff]
  %v94 = vld [vmem:[%s2 + $0x230] sm:$0xff]
  %v95 = vld [vmem:[%s2 + $0x238] sm:$0xff]
  %v96 = vld [vmem:[%s2 + $0x240] sm:$0xff]
  %v97 = vld [vmem:[%s2 + $0x248] sm:$0xff]
  %v98 = vld [vmem:[%s2 + $0x250] sm:$0xff]
  %v99 = vld [vmem:[%s2 + $0x258] sm:$0xff]
  %v100 = vld [vmem:[%s2 + $0x260] sm:$0xff]
  %v101 = vld [vmem:[%s2 + $0x268] sm:$0xff]
  %v102 = vld [vmem:[%s2 + $0x270] sm:$0xff]
  %v103 = vld [vmem:[%s2 + $0x278] sm:$0xff]
  %v104 = vld [vmem:[%s2 + $0x280] sm:$0xff]
  %v105 = vld [vmem:[%s2 + $0x288] sm:$0xff]
  %v106 = vld [vmem:[%s2 + $0x290] sm:$0xff]
  %v107 = vld [vmem:[%s2 + $0x298] sm:$0xff]
  %v108 = vld [vmem:[%s2 + $0x2a0] sm:$0xff]
  %v109 = vld [vmem:[%s2 + $0x2a8] sm:$0xff]
  %v110 = vld [vmem:[%s2 + $0x2b0] sm:$0xff]
  %v111 = vld [vmem:[%s2 + $0x2b8] sm:$0xff]
  %v112 = vld [vmem:[%s2 + $0x2c0] sm:$0xff]
  %v113 = vld [vmem:[%s2 + $0x2c8] sm:$0xff]
  %v114 = vld [vmem:[%s2 + $0x2d0] sm:$0xff]
  %v115 = vld [vmem:[%s2 + $0x2d8] sm:$0xff]
  %v116 = vld [vmem:[%s2 + $0x2e0] sm:$0xff]
  %v117 = vld [vmem:[%s2 + $0x2e8] sm:$0xff]
  %v118 = vld [vmem:[%s2 + $0x2f0] sm:$0xff]
  %v119 = vld [vmem:[%s2 + $0x2f8] sm:$0xff]
  %v120 = vld [vmem:[%s3] sm:$0x3]
  %v121 = vld [vmem:[%s0] sm:$0xff]
  %v122 = vld [vmem:[%s0 + $0x8] sm:$0xff]
  %v123 = vld [vmem:[%s0 + $0x10] sm:$0xff]
  %v124 = vld [vmem:[%s0 + $0x18] sm:$0xff]
  %v125 = vld [vmem:[%s0 + $0x20] sm:$0xff]
  %v126 = vld [vmem:[%s0 + $0x28] sm:$0xff]
  %v127 = vpack.c.bf16 %v121, %v121
  %v128 = vpack.c.bf16 %v122, %v122
  %v129 = vpack.c.bf16 %v123, %v123
  %v130 = vpack.c.bf16 %v124, %v124
  %v131 = vpack.c.bf16 %v125, %v125
  %v132 = vpack.c.bf16 %v126, %v126
  %v134 = vlaneseq
  %v135 = vshrl.u32 %v134, 7
  %v136 = vsub.s32 0, %v135
  %v137 = vrot.slane %v120, %v136
  %v138 = vlaneseq
  %v139 = vshrl.u32 %v138, 7
  %v140 = vsub.s32 1, %v139
  %v141 = vrot.slane %v120, %v140
  %v240 = vunpack.c.l.b16 %v24
  %v241 = vunpack.c.h.b16 %v24
  %v242 = vunpack.c.l.b16 %v25
  %v243 = vunpack.c.h.b16 %v25
  %v244 = vunpack.c.l.b16 %v26
  %v245 = vunpack.c.h.b16 %v26
  %v246 = vunpack.c.l.b16 %v27
  %v247 = vunpack.c.h.b16 %v27
  %v248 = vunpack.c.l.b16 %v28
  %v249 = vunpack.c.h.b16 %v28
  %v250 = vunpack.c.l.b16 %v29
  %v251 = vunpack.c.h.b16 %v29
  %v252 = vunpack.c.l.b16 %v30
  %v253 = vunpack.c.h.b16 %v30
  %v254 = vunpack.c.l.b16 %v31
  %v255 = vunpack.c.h.b16 %v31
  %v256 = vunpack.c.l.b16 %v32
  %v257 = vunpack.c.h.b16 %v32
  %v258 = vunpack.c.l.b16 %v33
  %v259 = vunpack.c.h.b16 %v33
  %v260 = vunpack.c.l.b16 %v34
  %v261 = vunpack.c.h.b16 %v34
  %v262 = vunpack.c.l.b16 %v35
  %v263 = vunpack.c.h.b16 %v35
  %v264 = vunpack.c.l.b16 %v36
  %v265 = vunpack.c.h.b16 %v36
  %v266 = vunpack.c.l.b16 %v37
  %v267 = vunpack.c.h.b16 %v37
  %v268 = vunpack.c.l.b16 %v38
  %v269 = vunpack.c.h.b16 %v38
  %v270 = vunpack.c.l.b16 %v39
  %v271 = vunpack.c.h.b16 %v39
  %v272 = vunpack.c.l.b16 %v40
  %v273 = vunpack.c.h.b16 %v40
  %v274 = vunpack.c.l.b16 %v41
  %v275 = vunpack.c.h.b16 %v41
  %v276 = vunpack.c.l.b16 %v42
  %v277 = vunpack.c.h.b16 %v42
  %v278 = vunpack.c.l.b16 %v43
  %v279 = vunpack.c.h.b16 %v43
  %v280 = vunpack.c.l.b16 %v44
  %v281 = vunpack.c.h.b16 %v44
  %v282 = vunpack.c.l.b16 %v45
  %v283 = vunpack.c.h.b16 %v45
  %v284 = vunpack.c.l.b16 %v46
  %v285 = vunpack.c.h.b16 %v46
  %v286 = vunpack.c.l.b16 %v47
  %v287 = vunpack.c.h.b16 %v47
  %v288 = vunpack.c.l.b16 %v48
  %v289 = vunpack.c.h.b16 %v48
  %v290 = vunpack.c.l.b16 %v49
  %v291 = vunpack.c.h.b16 %v49
  %v292 = vunpack.c.l.b16 %v50
  %v293 = vunpack.c.h.b16 %v50
  %v294 = vunpack.c.l.b16 %v51
  %v295 = vunpack.c.h.b16 %v51
  %v296 = vunpack.c.l.b16 %v52
  %v297 = vunpack.c.h.b16 %v52
  %v298 = vunpack.c.l.b16 %v53
  %v299 = vunpack.c.h.b16 %v53
  %v300 = vunpack.c.l.b16 %v54
  %v301 = vunpack.c.h.b16 %v54
  %v302 = vunpack.c.l.b16 %v55
  %v303 = vunpack.c.h.b16 %v55
  %v304 = vunpack.c.l.b16 %v56
  %v305 = vunpack.c.h.b16 %v56
  %v306 = vunpack.c.l.b16 %v57
  %v307 = vunpack.c.h.b16 %v57
  %v308 = vunpack.c.l.b16 %v58
  %v309 = vunpack.c.h.b16 %v58
  %v310 = vunpack.c.l.b16 %v59
  %v311 = vunpack.c.h.b16 %v59
  %v312 = vunpack.c.l.b16 %v60
  %v313 = vunpack.c.h.b16 %v60
  %v314 = vunpack.c.l.b16 %v61
  %v315 = vunpack.c.h.b16 %v61
  %v316 = vunpack.c.l.b16 %v62
  %v317 = vunpack.c.h.b16 %v62
  %v318 = vunpack.c.l.b16 %v63
  %v319 = vunpack.c.h.b16 %v63
  %v320 = vunpack.c.l.b16 %v64
  %v321 = vunpack.c.h.b16 %v64
  %v322 = vunpack.c.l.b16 %v65
  %v323 = vunpack.c.h.b16 %v65
  %v324 = vunpack.c.l.b16 %v66
  %v325 = vunpack.c.h.b16 %v66
  %v326 = vunpack.c.l.b16 %v67
  %v327 = vunpack.c.h.b16 %v67
  %v328 = vunpack.c.l.b16 %v68
  %v329 = vunpack.c.h.b16 %v68
  %v330 = vunpack.c.l.b16 %v69
  %v331 = vunpack.c.h.b16 %v69
  %v332 = vunpack.c.l.b16 %v70
  %v333 = vunpack.c.h.b16 %v70
  %v334 = vunpack.c.l.b16 %v71
  %v335 = vunpack.c.h.b16 %v71
  %v336 = vunpack.c.l.b16 %v72
  %v337 = vunpack.c.h.b16 %v72
  %v338 = vunpack.c.l.b16 %v73
  %v339 = vunpack.c.h.b16 %v73
  %v340 = vunpack.c.l.b16 %v74
  %v341 = vunpack.c.h.b16 %v74
  %v342 = vunpack.c.l.b16 %v75
  %v343 = vunpack.c.h.b16 %v75
  %v344 = vunpack.c.l.b16 %v76
  %v345 = vunpack.c.h.b16 %v76
  %v346 = vunpack.c.l.b16 %v77
  %v347 = vunpack.c.h.b16 %v77
  %v348 = vunpack.c.l.b16 %v78
  %v349 = vunpack.c.h.b16 %v78
  %v350 = vunpack.c.l.b16 %v79
  %v351 = vunpack.c.h.b16 %v79
  %v352 = vunpack.c.l.b16 %v80
  %v353 = vunpack.c.h.b16 %v80
  %v354 = vunpack.c.l.b16 %v81
  %v355 = vunpack.c.h.b16 %v81
  %v356 = vunpack.c.l.b16 %v82
  %v357 = vunpack.c.h.b16 %v82
  %v358 = vunpack.c.l.b16 %v83
  %v359 = vunpack.c.h.b16 %v83
  %v360 = vunpack.c.l.b16 %v84
  %v361 = vunpack.c.h.b16 %v84
  %v362 = vunpack.c.l.b16 %v85
  %v363 = vunpack.c.h.b16 %v85
  %v364 = vunpack.c.l.b16 %v86
  %v365 = vunpack.c.h.b16 %v86
  %v366 = vunpack.c.l.b16 %v87
  %v367 = vunpack.c.h.b16 %v87
  %v368 = vunpack.c.l.b16 %v88
  %v369 = vunpack.c.h.b16 %v88
  %v370 = vunpack.c.l.b16 %v89
  %v371 = vunpack.c.h.b16 %v89
  %v372 = vunpack.c.l.b16 %v90
  %v373 = vunpack.c.h.b16 %v90
  %v374 = vunpack.c.l.b16 %v91
  %v375 = vunpack.c.h.b16 %v91
  %v376 = vunpack.c.l.b16 %v92
  %v377 = vunpack.c.h.b16 %v92
  %v378 = vunpack.c.l.b16 %v93
  %v379 = vunpack.c.h.b16 %v93
  %v380 = vunpack.c.l.b16 %v94
  %v381 = vunpack.c.h.b16 %v94
  %v382 = vunpack.c.l.b16 %v95
  %v383 = vunpack.c.h.b16 %v95
  %v384 = vunpack.c.l.b16 %v96
  %v385 = vunpack.c.h.b16 %v96
  %v386 = vunpack.c.l.b16 %v97
  %v387 = vunpack.c.h.b16 %v97
  %v388 = vunpack.c.l.b16 %v98
  %v389 = vunpack.c.h.b16 %v98
  %v390 = vunpack.c.l.b16 %v99
  %v391 = vunpack.c.h.b16 %v99
  %v392 = vunpack.c.l.b16 %v100
  %v393 = vunpack.c.h.b16 %v100
  %v394 = vunpack.c.l.b16 %v101
  %v395 = vunpack.c.h.b16 %v101
  %v396 = vunpack.c.l.b16 %v102
  %v397 = vunpack.c.h.b16 %v102
  %v398 = vunpack.c.l.b16 %v103
  %v399 = vunpack.c.h.b16 %v103
  %v400 = vunpack.c.l.b16 %v104
  %v401 = vunpack.c.h.b16 %v104
  %v402 = vunpack.c.l.b16 %v105
  %v403 = vunpack.c.h.b16 %v105
  %v404 = vunpack.c.l.b16 %v106
  %v405 = vunpack.c.h.b16 %v106
  %v406 = vunpack.c.l.b16 %v107
  %v407 = vunpack.c.h.b16 %v107
  %v408 = vunpack.c.l.b16 %v108
  %v409 = vunpack.c.h.b16 %v108
  %v410 = vunpack.c.l.b16 %v109
  %v411 = vunpack.c.h.b16 %v109
  %v412 = vunpack.c.l.b16 %v110
  %v413 = vunpack.c.h.b16 %v110
  %v414 = vunpack.c.l.b16 %v111
  %v415 = vunpack.c.h.b16 %v111
  %v416 = vunpack.c.l.b16 %v112
  %v417 = vunpack.c.h.b16 %v112
  %v418 = vunpack.c.l.b16 %v113
  %v419 = vunpack.c.h.b16 %v113
  %v420 = vunpack.c.l.b16 %v114
  %v421 = vunpack.c.h.b16 %v114
  %v422 = vunpack.c.l.b16 %v115
  %v423 = vunpack.c.h.b16 %v115
  %v424 = vunpack.c.l.b16 %v116
  %v425 = vunpack.c.h.b16 %v116
  %v426 = vunpack.c.l.b16 %v117
  %v427 = vunpack.c.h.b16 %v117
  %v428 = vunpack.c.l.b16 %v118
  %v429 = vunpack.c.h.b16 %v118
  %v430 = vunpack.c.l.b16 %v119
  %v431 = vunpack.c.h.b16 %v119
  %v432 = vpack.c.b16 %v242, %v240
  %v433 = vpack.c.b16 %v243, %v241
  %v434 = vpack.c.b16 %v246, %v244
  %v435 = vpack.c.b16 %v247, %v245
  %v436 = vpack.c.b16 %v250, %v248
  %v437 = vpack.c.b16 %v251, %v249
  %v438 = vpack.c.b16 %v254, %v252
  %v439 = vpack.c.b16 %v255, %v253
  %v440 = vpack.c.b16 %v258, %v256
  %v441 = vpack.c.b16 %v259, %v257
  %v442 = vpack.c.b16 %v262, %v260
  %v443 = vpack.c.b16 %v263, %v261
  %v444 = vpack.c.b16 %v266, %v264
  %v445 = vpack.c.b16 %v267, %v265
  %v446 = vpack.c.b16 %v270, %v268
  %v447 = vpack.c.b16 %v271, %v269
  %v448 = vpack.c.b16 %v274, %v272
  %v449 = vpack.c.b16 %v275, %v273
  %v450 = vpack.c.b16 %v278, %v276
  %v451 = vpack.c.b16 %v279, %v277
  %v452 = vpack.c.b16 %v282, %v280
  %v453 = vpack.c.b16 %v283, %v281
  %v454 = vpack.c.b16 %v286, %v284
  %v455 = vpack.c.b16 %v287, %v285
  %v456 = vpack.c.b16 %v290, %v288
  %v457 = vpack.c.b16 %v291, %v289
  %v458 = vpack.c.b16 %v294, %v292
  %v459 = vpack.c.b16 %v295, %v293
  %v460 = vpack.c.b16 %v298, %v296
  %v461 = vpack.c.b16 %v299, %v297
  %v462 = vpack.c.b16 %v302, %v300
  %v463 = vpack.c.b16 %v303, %v301
  %v464 = vpack.c.b16 %v306, %v304
  %v465 = vpack.c.b16 %v307, %v305
  %v466 = vpack.c.b16 %v310, %v308
  %v467 = vpack.c.b16 %v311, %v309
  %v468 = vpack.c.b16 %v314, %v312
  %v469 = vpack.c.b16 %v315, %v313
  %v470 = vpack.c.b16 %v318, %v316
  %v471 = vpack.c.b16 %v319, %v317
  %v472 = vpack.c.b16 %v322, %v320
  %v473 = vpack.c.b16 %v323, %v321
  %v474 = vpack.c.b16 %v326, %v324
  %v475 = vpack.c.b16 %v327, %v325
  %v476 = vpack.c.b16 %v330, %v328
  %v477 = vpack.c.b16 %v331, %v329
  %v478 = vpack.c.b16 %v334, %v332
  %v479 = vpack.c.b16 %v335, %v333
  %v480 = vpack.c.b16 %v338, %v336
  %v481 = vpack.c.b16 %v339, %v337
  %v482 = vpack.c.b16 %v342, %v340
  %v483 = vpack.c.b16 %v343, %v341
  %v484 = vpack.c.b16 %v346, %v344
  %v485 = vpack.c.b16 %v347, %v345
  %v486 = vpack.c.b16 %v350, %v348
  %v487 = vpack.c.b16 %v351, %v349
  %v488 = vpack.c.b16 %v354, %v352
  %v489 = vpack.c.b16 %v355, %v353
  %v490 = vpack.c.b16 %v358, %v356
  %v491 = vpack.c.b16 %v359, %v357
  %v492 = vpack.c.b16 %v362, %v360
  %v493 = vpack.c.b16 %v363, %v361
  %v494 = vpack.c.b16 %v366, %v364
  %v495 = vpack.c.b16 %v367, %v365
  %v496 = vpack.c.b16 %v370, %v368
  %v497 = vpack.c.b16 %v371, %v369
  %v498 = vpack.c.b16 %v374, %v372
  %v499 = vpack.c.b16 %v375, %v373
  %v500 = vpack.c.b16 %v378, %v376
  %v501 = vpack.c.b16 %v379, %v377
  %v502 = vpack.c.b16 %v382, %v380
  %v503 = vpack.c.b16 %v383, %v381
  %v504 = vpack.c.b16 %v386, %v384
  %v505 = vpack.c.b16 %v387, %v385
  %v506 = vpack.c.b16 %v390, %v388
  %v507 = vpack.c.b16 %v391, %v389
  %v508 = vpack.c.b16 %v394, %v392
  %v509 = vpack.c.b16 %v395, %v393
  %v510 = vpack.c.b16 %v398, %v396
  %v511 = vpack.c.b16 %v399, %v397
  %v512 = vpack.c.b16 %v402, %v400
  %v513 = vpack.c.b16 %v403, %v401
  %v514 = vpack.c.b16 %v406, %v404
  %v515 = vpack.c.b16 %v407, %v405
  %v516 = vpack.c.b16 %v410, %v408
  %v517 = vpack.c.b16 %v411, %v409
  %v518 = vpack.c.b16 %v414, %v412
  %v519 = vpack.c.b16 %v415, %v413
  %v520 = vpack.c.b16 %v418, %v416
  %v521 = vpack.c.b16 %v419, %v417
  %v522 = vpack.c.b16 %v422, %v420
  %v523 = vpack.c.b16 %v423, %v421
  %v524 = vpack.c.b16 %v426, %v424
  %v525 = vpack.c.b16 %v427, %v425
  %v526 = vpack.c.b16 %v430, %v428
  %v527 = vpack.c.b16 %v431, %v429
  %624 = vmatprep.subr.bf16.mxu0 %v433
  %625 = vmatpush1.bf16.msra.mxu0 %v432
  %626 = vmatprep.subr.bf16.mxu0 %v435
  %627 = vmatpush1.bf16.msra.mxu0 %v434
  %628 = vmatprep.subr.bf16.mxu0 %v437
  %629 = vmatpush1.bf16.msra.mxu0 %v436
  %630 = vmatprep.subr.bf16.mxu0 %v439
  %631 = vmatpush1.bf16.msra.mxu0 %v438
  %632 = vmatprep.subr.bf16.mxu0 %v441
  %633 = vmatpush1.bf16.msra.mxu0 %v440
  %634 = vmatprep.subr.bf16.mxu0 %v443
  %635 = vmatpush1.bf16.msra.mxu0 %v442
  %636 = vmatprep.subr.bf16.mxu0 %v445
  %637 = vmatpush1.bf16.msra.mxu0 %v444
  %638 = vmatprep.subr.bf16.mxu0 %v447
  %639 = vmatpush1.bf16.msra.mxu0 %v446
  %640 = vmatprep.subr.bf16.mxu0 %v449
  %641 = vmatpush1.bf16.msra.mxu0 %v448
  %642 = vmatprep.subr.bf16.mxu0 %v451
  %643 = vmatpush1.bf16.msra.mxu0 %v450
  %644 = vmatprep.subr.bf16.mxu0 %v453
  %645 = vmatpush1.bf16.msra.mxu0 %v452
  %646 = vmatprep.subr.bf16.mxu0 %v455
  %647 = vmatpush1.bf16.msra.mxu0 %v454
  %648 = vmatprep.subr.bf16.mxu0 %v457
  %649 = vmatpush1.bf16.msra.mxu0 %v456
  %650 = vmatprep.subr.bf16.mxu0 %v459
  %651 = vmatpush1.bf16.msra.mxu0 %v458
  %652 = vmatprep.subr.bf16.mxu0 %v461
  %653 = vmatpush1.bf16.msra.mxu0 %v460
  %654 = vmatprep.subr.bf16.mxu0 %v463
  %655 = vmatpush1.bf16.msra.mxu0 %v462
  %656 = vmatprep.mubr.bf16.mxu0 %v128
  %657 = vmatmul.mubr.bf16.gmra.mrb[0].mxu0 %v127
  %v658 = vpop.f32.mrb[0].mxu0
  %v659 = vadd.f32 %v137, %v658
  %v660 = vpop.f32.mrb[0].mxu0
  %v661 = vadd.f32 %v141, %v660
  %v662 = vpop.f32.mrb[0].mxu0
  %v663 = vpop.f32.mrb[0].mxu0
  %664 = vdwg.mxu0
  %665 = vmatprep.subr.bf16.mxu0 %v465
  %666 = vmatpush1.bf16.msra.mxu0 %v464
  %667 = vmatprep.subr.bf16.mxu0 %v467
  %668 = vmatpush1.bf16.msra.mxu0 %v466
  %669 = vmatprep.subr.bf16.mxu0 %v469
  %670 = vmatpush1.bf16.msra.mxu0 %v468
  %671 = vmatprep.subr.bf16.mxu0 %v471
  %672 = vmatpush1.bf16.msra.mxu0 %v470
  %673 = vmatprep.subr.bf16.mxu0 %v473
  %674 = vmatpush1.bf16.msra.mxu0 %v472
  %675 = vmatprep.subr.bf16.mxu0 %v475
  %676 = vmatpush1.bf16.msra.mxu0 %v474
  %677 = vmatprep.subr.bf16.mxu0 %v477
  %678 = vmatpush1.bf16.msra.mxu0 %v476
  %679 = vmatprep.subr.bf16.mxu0 %v479
  %680 = vmatpush1.bf16.msra.mxu0 %v478
  %681 = vmatprep.subr.bf16.mxu0 %v481
  %682 = vmatpush1.bf16.msra.mxu0 %v480
  %683 = vmatprep.subr.bf16.mxu0 %v483
  %684 = vmatpush1.bf16.msra.mxu0 %v482
  %685 = vmatprep.subr.bf16.mxu0 %v485
  %686 = vmatpush1.bf16.msra.mxu0 %v484
  %687 = vmatprep.subr.bf16.mxu0 %v487
  %688 = vmatpush1.bf16.msra.mxu0 %v486
  %689 = vmatprep.subr.bf16.mxu0 %v489
  %690 = vmatpush1.bf16.msra.mxu0 %v488
  %691 = vmatprep.subr.bf16.mxu0 %v491
  %692 = vmatpush1.bf16.msra.mxu0 %v490
  %693 = vmatprep.subr.bf16.mxu0 %v493
  %694 = vmatpush1.bf16.msra.mxu0 %v492
  %695 = vmatprep.subr.bf16.mxu0 %v495
  %696 = vmatpush1.bf16.msra.mxu0 %v494
  %697 = vmatprep.mubr.bf16.mxu0 %v130
  %698 = vmatmul.mubr.bf16.gmra.mrb[0].mxu0 %v129
  %v699 = vpop.f32.mrb[0].mxu0
  %v700 = vadd.f32 %v659, %v699
  %v701 = vpop.f32.mrb[0].mxu0
  %v702 = vadd.f32 %v661, %v701
  %v703 = vpop.f32.mrb[0].mxu0
  %v704 = vpop.f32.mrb[0].mxu0
  %705 = vdwg.mxu0
  %706 = vmatprep.subr.bf16.mxu0 %v497
  %707 = vmatpush1.bf16.msra.mxu0 %v496
  %708 = vmatprep.subr.bf16.mxu0 %v499
  %709 = vmatpush1.bf16.msra.mxu0 %v498
  %710 = vmatprep.subr.bf16.mxu0 %v501
  %711 = vmatpush1.bf16.msra.mxu0 %v500
  %712 = vmatprep.subr.bf16.mxu0 %v503
  %713 = vmatpush1.bf16.msra.mxu0 %v502
  %714 = vmatprep.subr.bf16.mxu0 %v505
  %715 = vmatpush1.bf16.msra.mxu0 %v504
  %716 = vmatprep.subr.bf16.mxu0 %v507
  %717 = vmatpush1.bf16.msra.mxu0 %v506
  %718 = vmatprep.subr.bf16.mxu0 %v509
  %719 = vmatpush1.bf16.msra.mxu0 %v508
  %720 = vmatprep.subr.bf16.mxu0 %v511
  %721 = vmatpush1.bf16.msra.mxu0 %v510
  %722 = vmatprep.subr.bf16.mxu0 %v513
  %723 = vmatpush1.bf16.msra.mxu0 %v512
  %724 = vmatprep.subr.bf16.mxu0 %v515
  %725 = vmatpush1.bf16.msra.mxu0 %v514
  %726 = vmatprep.subr.bf16.mxu0 %v517
  %727 = vmatpush1.bf16.msra.mxu0 %v516
  %728 = vmatprep.subr.bf16.mxu0 %v519
  %729 = vmatpush1.bf16.msra.mxu0 %v518
  %730 = vmatprep.subr.bf16.mxu0 %v521
  %731 = vmatpush1.bf16.msra.mxu0 %v520
  %732 = vmatprep.subr.bf16.mxu0 %v523
  %733 = vmatpush1.bf16.msra.mxu0 %v522
  %734 = vmatprep.subr.bf16.mxu0 %v525
  %735 = vmatpush1.bf16.msra.mxu0 %v524
  %736 = vmatprep.subr.bf16.mxu0 %v527
  %737 = vmatpush1.bf16.msra.mxu0 %v526
  %738 = vmatprep.mubr.bf16.mxu0 %v132
  %739 = vmatmul.mubr.bf16.gmra.mrb[0].mxu0 %v131
  %v740 = vpop.f32.mrb[0].mxu0
  %v741 = vadd.f32 %v700, %v740
  %v742 = vpop.f32.mrb[0].mxu0
  %v743 = vadd.f32 %v702, %v742
  %v744 = vpop.f32.mrb[0].mxu0
  %v745 = vpop.f32.mrb[0].mxu0
  %746 = vdwg.mxu0
  %v747 = vmax.f32 %v741, 0.0
  %v748 = vmax.f32 %v743, 0.0
  %v749 = vld [vmem:[%s1] sm:$0xff]
  %v750 = vld [vmem:[%s1 + $0x8] sm:$0xff]
  %v751 = vld [vmem:[%s1 + $0x10] sm:$0xff]
  %v752 = vld [vmem:[%s1 + $0x18] sm:$0xff]
  %v753 = vld [vmem:[%s1 + $0x20] sm:$0xff]
  %v754 = vld [vmem:[%s1 + $0x28] sm:$0xff]
  %v755 = vpack.c.bf16 %v749, %v749
  %v756 = vpack.c.bf16 %v750, %v750
  %v757 = vpack.c.bf16 %v751, %v751
  %v758 = vpack.c.bf16 %v752, %v752
  %v759 = vpack.c.bf16 %v753, %v753
  %v760 = vpack.c.bf16 %v754, %v754
  %761 = vmatprep.subr.bf16.mxu0 %v433
  %762 = vmatpush1.bf16.msra.mxu0 %v432
  %763 = vmatprep.subr.bf16.mxu0 %v435
  %764 = vmatpush1.bf16.msra.mxu0 %v434
  %765 = vmatprep.subr.bf16.mxu0 %v437
  %766 = vmatpush1.bf16.msra.mxu0 %v436
  %767 = vmatprep.subr.bf16.mxu0 %v439
  %768 = vmatpush1.bf16.msra.mxu0 %v438
  %769 = vmatprep.subr.bf16.mxu0 %v441
  %770 = vmatpush1.bf16.msra.mxu0 %v440
  %771 = vmatprep.subr.bf16.mxu0 %v443
  %772 = vmatpush1.bf16.msra.mxu0 %v442
  %773 = vmatprep.subr.bf16.mxu0 %v445
  %774 = vmatpush1.bf16.msra.mxu0 %v444
  %775 = vmatprep.subr.bf16.mxu0 %v447
  %776 = vmatpush1.bf16.msra.mxu0 %v446
  %777 = vmatprep.subr.bf16.mxu0 %v449
  %778 = vmatpush1.bf16.msra.mxu0 %v448
  %779 = vmatprep.subr.bf16.mxu0 %v451
  %780 = vmatpush1.bf16.msra.mxu0 %v450
  %781 = vmatprep.subr.bf16.mxu0 %v453
  %782 = vmatpush1.bf16.msra.mxu0 %v452
  %783 = vmatprep.subr.bf16.mxu0 %v455
  %784 = vmatpush1.bf16.msra.mxu0 %v454
  %785 = vmatprep.subr.bf16.mxu0 %v457
  %786 = vmatpush1.bf16.msra.mxu0 %v456
  %787 = vmatprep.subr.bf16.mxu0 %v459
  %788 = vmatpush1.bf16.msra.mxu0 %v458
  %789 = vmatprep.subr.bf16.mxu0 %v461
  %790 = vmatpush1.bf16.msra.mxu0 %v460
  %791 = vmatprep.subr.bf16.mxu0 %v463
  %792 = vmatpush1.bf16.msra.mxu0 %v462
  %793 = vmatprep.mubr.bf16.mxu0 %v756
  %794 = vmatmul.mubr.bf16.gmra.mrb[0].mxu0 %v755
  %v795 = vpop.f32.mrb[0].mxu0
  %v796 = vadd.f32 %v137, %v795
  %v797 = vpop.f32.mrb[0].mxu0
  %v798 = vadd.f32 %v141, %v797
  %v799 = vpop.f32.mrb[0].mxu0
  %v800 = vpop.f32.mrb[0].mxu0
  %801 = vdwg.mxu0
  %802 = vmatprep.subr.bf16.mxu0 %v465
  %803 = vmatpush1.bf16.msra.mxu0 %v464
  %804 = vmatprep.subr.bf16.mxu0 %v467
  %805 = vmatpush1.bf16.msra.mxu0 %v466
  %806 = vmatprep.subr.bf16.mxu0 %v469
  %807 = vmatpush1.bf16.msra.mxu0 %v468
  %808 = vmatprep.subr.bf16.mxu0 %v471
  %809 = vmatpush1.bf16.msra.mxu0 %v470
  %810 = vmatprep.subr.bf16.mxu0 %v473
  %811 = vmatpush1.bf16.msra.mxu0 %v472
  %812 = vmatprep.subr.bf16.mxu0 %v475
  %813 = vmatpush1.bf16.msra.mxu0 %v474
  %814 = vmatprep.subr.bf16.mxu0 %v477
  %815 = vmatpush1.bf16.msra.mxu0 %v476
  %816 = vmatprep.subr.bf16.mxu0 %v479
  %817 = vmatpush1.bf16.msra.mxu0 %v478
  %818 = vmatprep.subr.bf16.mxu0 %v481
  %819 = vmatpush1.bf16.msra.mxu0 %v480
  %820 = vmatprep.subr.bf16.mxu0 %v483
  %821 = vmatpush1.bf16.msra.mxu0 %v482
  %822 = vmatprep.subr.bf16.mxu0 %v485
  %823 = vmatpush1.bf16.msra.mxu0 %v484
  %824 = vmatprep.subr.bf16.mxu0 %v487
  %825 = vmatpush1.bf16.msra.mxu0 %v486
  %826 = vmatprep.subr.bf16.mxu0 %v489
  %827 = vmatpush1.bf16.msra.mxu0 %v488
  %828 = vmatprep.subr.bf16.mxu0 %v491
  %829 = vmatpush1.bf16.msra.mxu0 %v490
  %830 = vmatprep.subr.bf16.mxu0 %v493
  %831 = vmatpush1.bf16.msra.mxu0 %v492
  %832 = vmatprep.subr.bf16.mxu0 %v495
  %833 = vmatpush1.bf16.msra.mxu0 %v494
  %834 = vmatprep.mubr.bf16.mxu0 %v758
  %835 = vmatmul.mubr.bf16.gmra.mrb[0].mxu0 %v757
  %v836 = vpop.f32.mrb[0].mxu0
  %v837 = vadd.f32 %v796, %v836
  %v838 = vpop.f32.mrb[0].mxu0
  %v839 = vadd.f32 %v798, %v838
  %v840 = vpop.f32.mrb[0].mxu0
  %v841 = vpop.f32.mrb[0].mxu0
  %842 = vdwg.mxu0
  %843 = vmatprep.subr.bf16.mxu0 %v497
  %844 = vmatpush1.bf16.msra.mxu0 %v496
  %845 = vmatprep.subr.bf16.mxu0 %v499
  %846 = vmatpush1.bf16.msra.mxu0 %v498
  %847 = vmatprep.subr.bf16.mxu0 %v501
  %848 = vmatpush1.bf16.msra.mxu0 %v500
  %849 = vmatprep.subr.bf16.mxu0 %v503
  %850 = vmatpush1.bf16.msra.mxu0 %v502
  %851 = vmatprep.subr.bf16.mxu0 %v505
  %852 = vmatpush1.bf16.msra.mxu0 %v504
  %853 = vmatprep.subr.bf16.mxu0 %v507
  %854 = vmatpush1.bf16.msra.mxu0 %v506
  %855 = vmatprep.subr.bf16.mxu0 %v509
  %856 = vmatpush1.bf16.msra.mxu0 %v508
  %857 = vmatprep.subr.bf16.mxu0 %v511
  %858 = vmatpush1.bf16.msra.mxu0 %v510
  %859 = vmatprep.subr.bf16.mxu0 %v513
  %860 = vmatpush1.bf16.msra.mxu0 %v512
  %861 = vmatprep.subr.bf16.mxu0 %v515
  %862 = vmatpush1.bf16.msra.mxu0 %v514
  %863 = vmatprep.subr.bf16.mxu0 %v517
  %864 = vmatpush1.bf16.msra.mxu0 %v516
  %865 = vmatprep.subr.bf16.mxu0 %v519
  %866 = vmatpush1.bf16.msra.mxu0 %v518
  %867 = vmatprep.subr.bf16.mxu0 %v521
  %868 = vmatpush1.bf16.msra.mxu0 %v520
  %869 = vmatprep.subr.bf16.mxu0 %v523
  %870 = vmatpush1.bf16.msra.mxu0 %v522
  %871 = vmatprep.subr.bf16.mxu0 %v525
  %872 = vmatpush1.bf16.msra.mxu0 %v524
  %873 = vmatprep.subr.bf16.mxu0 %v527
  %874 = vmatpush1.bf16.msra.mxu0 %v526
  %875 = vmatprep.mubr.bf16.mxu0 %v760
  %876 = vmatmul.mubr.bf16.gmra.mrb[0].mxu0 %v759
  %v877 = vpop.f32.mrb[0].mxu0
  %v878 = vadd.f32 %v837, %v877
  %v879 = vpop.f32.mrb[0].mxu0
  %v880 = vadd.f32 %v839, %v879
  %v881 = vpop.f32.mrb[0].mxu0
  %v882 = vpop.f32.mrb[0].mxu0
  %883 = vdwg.mxu0
  %v884 = vmax.f32 %v878, 0.0
  %v885 = vmax.f32 %v880, 0.0
  %v886 = vld [vmem:[%s4] ss:$2 sm:$0x3]
  %v888 = vlaneseq
  %v889 = vshrl.u32 %v888, 7
  %v890 = vsub.s32 0, %v889
  %v891 = vrot.slane %v886, %v890
  %v892 = vlaneseq
  %v893 = vshrl.u32 %v892, 7
  %v894 = vsub.s32 1, %v893
  %v895 = vrot.slane %v886, %v894
  %v898 = vmul.f32 %v747, %v891
  %v899 = vmul.f32 %v748, %v895
  %s900 = scalar_lea.vmem %s4, 1
  %v901 = vld [vmem:[%s900] ss:$2 sm:$0x3]
  %v903 = vlaneseq
  %v904 = vshrl.u32 %v903, 7
  %v905 = vsub.s32 0, %v904
  %v906 = vrot.slane %v901, %v905
  %v907 = vlaneseq
  %v908 = vshrl.u32 %v907, 7
  %v909 = vsub.s32 1, %v908
  %v910 = vrot.slane %v901, %v909
  %v913 = vmul.f32 %v884, %v906
  %v914 = vmul.f32 %v885, %v910
  %v915 = vadd.f32 %v898, %v913
  %v916 = vadd.f32 %v899, %v914
  %v917 = vadd.f32 %v915, %v916
  %918 = vadd.xlane.f32.xlu0 %v917
  %v919 = vpop.xlane.xlu0 %918
  %s920 = sld [smem:[#allocation2]]
  %v921 = vstv %s920
  %v922 = vadd.f32 %v919, %v921
  %v923 = vsub.f32 0.0, %v922
  %v924 = vmul.f32 %v923, 0.0045951
  %v925 = vmul.f32 %v924, 1.442695
  %v926 = vpow.pop %v925
  %v927 = vadd.f32 %v926, 1.0
  %v928 = vrcp.pop %v927
  %vm929 = vcmask 7168
  %930 = vst.msk [vmem:[%s6] sm:$0xff] %vm929, %v928
  // Predicated region
  $region26: #{nn_forward.1} parent=0 // pred_check
    _
  $region27: #{nn_forward.1} parent=0 // pred_check_branch
    %932 = sbr.rel (0) target = $region29
  $region28: #{nn_forward.1} parent=0 // pred_region
    _
  $region29: #{nn_forward.1} parent=0 // pred_fallthru
    _
  // Predicated region
  $region30: #{nn_forward.1} parent=0 // pred_check
    _
  $region31: #{nn_forward.1} parent=0 // pred_check_branch
    %934 = sbr.rel (0) target = $region33
  $region32: #{nn_forward.1} parent=0 // pred_region
    _
  $region33: #{nn_forward.1} parent=0 // pred_fallthru
    _

</llo_original>
